<compile_context>
chip_gen: v7x
topology: tpu7x:2x2x1
jax: 0.10.0
libtpu: 0.0.40
codegen_flags: <defaults>
</compile_context>

<pallas_src>
import numpy as np
import jax
import jax.numpy as jnp
from jax.experimental import pallas as pl
from jax.experimental.pallas import tpu as pltpu

EMBED = 35                 # "embed" in the PyTorch module
PAD_SIZE = 256             # "pad_size"
FLAT = PAD_SIZE * EMBED    # 8960 = 70 * 128  -> lane-dense last dim


# ----------------------------------------------------------------------------
# Kernel: out = x + pe  (pe broadcast over the batch tile). Dropout == identity.
# ----------------------------------------------------------------------------
def pe_add_kernel(x_ref, pe_ref, o_ref):
    # x_ref : (TB, 8960)   pe_ref : (1, 8960)   o_ref : (TB, 8960)
    o_ref[...] = x_ref[...] + pe_ref[...]


# ----------------------------------------------------------------------------
# Fixed sinusoidal table, exactly as built in the PyTorch __init__.
# ----------------------------------------------------------------------------
def positional_encoding_table():
    pe = np.array(
        [[pos / np.power(10000.0, (i // 2 * 2.0) / EMBED) for i in range(EMBED)]
         for pos in range(PAD_SIZE)],
        dtype=np.float32)
    pe[:, 0::2] = np.sin(pe[:, 0::2])
    pe[:, 1::2] = np.cos(pe[:, 1::2])
    return pe                                        # (256, 35)


def _round_up(n, m):
    return ((n + m - 1) // m) * m


def _pick_batch_tile(B, max_tile):
    """Pick (tile, padded_B).

    Prefer the largest 8-aligned tile <= max_tile that divides B exactly, so no
    batch padding (and no extra HBM copy of x) is needed. Fall back to padding
    up to a multiple of 8 / of the tile for small or awkward batch sizes.
    """
    if B >= 8 and B % 8 == 0:
        t = (min(max_tile, B) // 8) * 8
        while t > 8 and B % t != 0:
            t -= 8
        if B % t == 0:
            return t, B                               # exact fit, no pad
    tb = min(max_tile, _round_up(B, 8))
    return tb, _round_up(B, tb)


# ----------------------------------------------------------------------------
# Wrapper: flatten to lane-dense (B, 8960), tile the batch, run the kernel.
# ----------------------------------------------------------------------------
def positional_encoding_forward(x, pe, *, batch_tile=128,
                                vmem_limit_bytes=32 * 1024 * 1024):
    B = x.shape[0]
    dtype = x.dtype
    x_flat = x.reshape(B, FLAT)                      # row-major (pos, emb) view
    pe_flat = pe.astype(dtype).reshape(1, FLAT)

    tb, bp = _pick_batch_tile(B, batch_tile)
    if bp != B:
        # Fallback only (tiny / non-8-aligned batches): pad rows are cheap adds
        # whose results are dropped afterwards.
        x_flat = jnp.pad(x_flat, ((0, bp - B), (0, 0)))

    out = pl.pallas_call(
        pe_add_kernel,
        out_shape=jax.ShapeDtypeStruct((bp, FLAT), dtype),
        grid_spec=pltpu.PrefetchScalarGridSpec(
            num_scalar_prefetch=0,
            grid=(bp // tb,),
            in_specs=[
                pl.BlockSpec((tb, FLAT), lambda i: (i, 0)),   # x tile (pipelined)
                pl.BlockSpec((1, FLAT), lambda i: (0, 0)),    # pe, VMEM-resident
            ],
            out_specs=pl.BlockSpec((tb, FLAT), lambda i: (i, 0)),
        ),
        compiler_params=pltpu.CompilerParams(
            dimension_semantics=("parallel",),        # independent tiles -> v7x 2 TCs
            vmem_limit_bytes=vmem_limit_bytes,        # ~18.5 MiB used at tb=128
        ),
    )(x_flat, pe_flat)

    if bp != B:
        out = out[:B]
    return out.reshape(B, PAD_SIZE, EMBED)


if __name__ == "__main__":
    B = 2
    key = jax.random.PRNGKey(0)
    x = jax.random.normal(key, (B, PAD_SIZE, EMBED), dtype=jnp.float32)
    pe = jnp.asarray(positional_encoding_table())

    fwd = jax.jit(lambda x_, pe_: positional_encoding_forward(x_, pe_))
    out = fwd(x, pe)
    jax.block_until_ready(out)

    # Reference (eval-mode): out = x + pe
    ref = x + pe[None, :, :]
    assert out.shape == (B, PAD_SIZE, EMBED)
    assert bool(jnp.all(jnp.isfinite(out)))
    np.testing.assert_allclose(np.asarray(out), np.asarray(ref),
                               rtol=1e-6, atol=1e-6)
    print("KERNEL_OK")
</pallas_src>

<mosaic_0001>
module attributes {stable_mosaic.version = 11 : i64} {
  func.func @pe_add_kernel(%arg0: i32, %arg1: memref<8x8960xf32, #tpu.memory_space<vmem>>, %arg2: memref<1x8960xf32, #tpu.memory_space<vmem>>, %arg3: memref<8x8960xf32, #tpu.memory_space<vmem>>) attributes {dimension_semantics = [#tpu.dimension_semantics<parallel>], iteration_bounds = array<i64: 1>, scalar_prefetch = 0 : i64, scratch_operands = 0 : i64, tpu.core_type = #tpu.core_type<tc>, window_params = [{transform_indices = @transform_0, window_bounds = array<i64: 8, 8960>}, {pipeline_mode = #tpu.pipeline_mode<synchronous>, transform_indices = @transform_1, window_bounds = array<i64: 1, 8960>}, {transform_indices = @transform_2, window_bounds = array<i64: 8, 8960>}]} {
    %c0 = arith.constant 0 : index
    %c0_0 = arith.constant 0 : index
    %0 = vector.load %arg1[%c0, %c0_0] : memref<8x8960xf32, #tpu.memory_space<vmem>>, vector<8x8960xf32>
    %c0_1 = arith.constant 0 : index
    %c0_2 = arith.constant 0 : index
    %1 = vector.load %arg2[%c0_1, %c0_2] : memref<1x8960xf32, #tpu.memory_space<vmem>>, vector<1x8960xf32>
    %2 = vector.broadcast %1 : vector<1x8960xf32> to vector<8x8960xf32>
    %3 = arith.addf %0, %2 : vector<8x8960xf32>
    %c0_3 = arith.constant 0 : index
    %c0_4 = arith.constant 0 : index
    %4 = vector.load %arg3[%c0_3, %c0_4] : memref<8x8960xf32, #tpu.memory_space<vmem>>, vector<8x8960xf32>
    tpu.vector_store %arg3[%c0_3, %c0_4], %3 {strides = array<i32>} : memref<8x8960xf32, #tpu.memory_space<vmem>>, vector<8x8960xf32>,
    return
  }
  func.func @transform_0(%arg0: i32) -> (i32, i32) {
    %c0_i32 = arith.constant 0 : i32
    %c0_i32_0 = arith.constant 0 : i32
    return %arg0, %c0_i32 : i32, i32
  }
  func.func @transform_1(%arg0: i32) -> (i32, i32) {
    %c0_i32 = arith.constant 0 : i32
    %c0_i32_0 = arith.constant 0 : i32
    %c0_i32_1 = arith.constant 0 : i32
    return %c0_i32, %c0_i32_0 : i32, i32
  }
  func.func @transform_2(%arg0: i32) -> (i32, i32) {
    %c0_i32 = arith.constant 0 : i32
    %c0_i32_0 = arith.constant 0 : i32
    return %arg0, %c0_i32 : i32, i32
  }
}

</mosaic_0001>

<llo_original>
// kernel: _lambda_.1
$region0: #{_lambda_.1}
  #allocation0 [shape = 'u32[]', space=smem, size = 0x4, offset = 0x4, fixed_abs, tag = 'smem constant byte address 0x4 - core index']
  #allocation1 [shape = 'u32[144,128]{1,0:T(1,128)}', space=vmem, size = 0x12000, scoped, tag = 'internal scratch']
  %s0 = inlined_call_operand.vmem [shape: f32[8,8960], index: 0, kind: input, shape index: {}]
  %s1 = inlined_call_operand.vmem [shape: f32[1,8960], index: 1, kind: input, shape index: {}]
  %s2 = inlined_call_operand.vmem [shape: f32[8,8960], index: 2, kind: output, shape index: {}]
  %s3 = sld [smem:[#allocation0]]
  $region18: #{_lambda_.1} parent=0
    _
  %s5 = ssub.s32 1, %s3
  %s6 = scalar_select 0, %s5, %s3
  // Predicated region
  $region2: #{_lambda_.1} parent=0 // pred_check
    _
  $region3: #{_lambda_.1} parent=0 // pred_check_branch
    %8 = sbr.rel (0) target = $region5
  $region4: #{_lambda_.1} parent=0 // pred_region
    _
  $region5: #{_lambda_.1} parent=0 // pred_fallthru
    _
  // Predicated region
  $region6: #{_lambda_.1} parent=0 // pred_check
    _
  $region7: #{_lambda_.1} parent=0 // pred_check_branch
    %10 = sbr.rel (0) target = $region9
  $region8: #{_lambda_.1} parent=0 // pred_region
    _
  $region9: #{_lambda_.1} parent=0 // pred_fallthru
    _
  %v11 = vld [vmem:[%s0] sm:$0xff]
  %v12 = vld [vmem:[%s0 + $0x8] sm:$0xff]
  %v13 = vld [vmem:[%s0 + $0x10] sm:$0xff]
  %v14 = vld [vmem:[%s0 + $0x18] sm:$0xff]
  %v15 = vld [vmem:[%s0 + $0x20] sm:$0xff]
  %v16 = vld [vmem:[%s0 + $0x28] sm:$0xff]
  %v17 = vld [vmem:[%s0 + $0x30] sm:$0xff]
  %v18 = vld [vmem:[%s0 + $0x38] sm:$0xff]
  %v19 = vld [vmem:[%s0 + $0x40] sm:$0xff]
  %v20 = vld [vmem:[%s0 + $0x48] sm:$0xff]
  %v21 = vld [vmem:[%s0 + $0x50] sm:$0xff]
  %v22 = vld [vmem:[%s0 + $0x58] sm:$0xff]
  %v23 = vld [vmem:[%s0 + $0x60] sm:$0xff]
  %v24 = vld [vmem:[%s0 + $0x68] sm:$0xff]
  %v25 = vld [vmem:[%s0 + $0x70] sm:$0xff]
  %v26 = vld [vmem:[%s0 + $0x78] sm:$0xff]
  %v27 = vld [vmem:[%s0 + $0x80] sm:$0xff]
  %v28 = vld [vmem:[%s0 + $0x88] sm:$0xff]
  %v29 = vld [vmem:[%s0 + $0x90] sm:$0xff]
  %v30 = vld [vmem:[%s0 + $0x98] sm:$0xff]
  %v31 = vld [vmem:[%s0 + $0xa0] sm:$0xff]
  %v32 = vld [vmem:[%s0 + $0xa8] sm:$0xff]
  %v33 = vld [vmem:[%s0 + $0xb0] sm:$0xff]
  %v34 = vld [vmem:[%s0 + $0xb8] sm:$0xff]
  %v35 = vld [vmem:[%s0 + $0xc0] sm:$0xff]
  %v36 = vld [vmem:[%s0 + $0xc8] sm:$0xff]
  %v37 = vld [vmem:[%s0 + $0xd0] sm:$0xff]
  %v38 = vld [vmem:[%s0 + $0xd8] sm:$0xff]
  %v39 = vld [vmem:[%s0 + $0xe0] sm:$0xff]
  %v40 = vld [vmem:[%s0 + $0xe8] sm:$0xff]
  %v41 = vld [vmem:[%s0 + $0xf0] sm:$0xff]
  %v42 = vld [vmem:[%s0 + $0xf8] sm:$0xff]
  %v43 = vld [vmem:[%s0 + $0x100] sm:$0xff]
  %v44 = vld [vmem:[%s0 + $0x108] sm:$0xff]
  %v45 = vld [vmem:[%s0 + $0x110] sm:$0xff]
  %v46 = vld [vmem:[%s0 + $0x118] sm:$0xff]
  %v47 = vld [vmem:[%s0 + $0x120] sm:$0xff]
  %v48 = vld [vmem:[%s0 + $0x128] sm:$0xff]
  %v49 = vld [vmem:[%s0 + $0x130] sm:$0xff]
  %v50 = vld [vmem:[%s0 + $0x138] sm:$0xff]
  %v51 = vld [vmem:[%s0 + $0x140] sm:$0xff]
  %v52 = vld [vmem:[%s0 + $0x148] sm:$0xff]
  %v53 = vld [vmem:[%s0 + $0x150] sm:$0xff]
  %v54 = vld [vmem:[%s0 + $0x158] sm:$0xff]
  %v55 = vld [vmem:[%s0 + $0x160] sm:$0xff]
  %v56 = vld [vmem:[%s0 + $0x168] sm:$0xff]
  %v57 = vld [vmem:[%s0 + $0x170] sm:$0xff]
  %v58 = vld [vmem:[%s0 + $0x178] sm:$0xff]
  %v59 = vld [vmem:[%s0 + $0x180] sm:$0xff]
  %v60 = vld [vmem:[%s0 + $0x188] sm:$0xff]
  %v61 = vld [vmem:[%s0 + $0x190] sm:$0xff]
  %v62 = vld [vmem:[%s0 + $0x198] sm:$0xff]
  %v63 = vld [vmem:[%s0 + $0x1a0] sm:$0xff]
  %v64 = vld [vmem:[%s0 + $0x1a8] sm:$0xff]
  %v65 = vld [vmem:[%s0 + $0x1b0] sm:$0xff]
  %v66 = vld [vmem:[%s0 + $0x1b8] sm:$0xff]
  %v67 = vld [vmem:[%s0 + $0x1c0] sm:$0xff]
  %v68 = vld [vmem:[%s0 + $0x1c8] sm:$0xff]
  %v69 = vld [vmem:[%s0 + $0x1d0] sm:$0xff]
  %v70 = vld [vmem:[%s0 + $0x1d8] sm:$0xff]
  %v71 = vld [vmem:[%s0 + $0x1e0] sm:$0xff]
  %v72 = vld [vmem:[%s0 + $0x1e8] sm:$0xff]
  %v73 = vld [vmem:[%s0 + $0x1f0] sm:$0xff]
  %v74 = vld [vmem:[%s0 + $0x1f8] sm:$0xff]
  %v75 = vld [vmem:[%s0 + $0x200] sm:$0xff]
  %v76 = vld [vmem:[%s0 + $0x208] sm:$0xff]
  %v77 = vld [vmem:[%s0 + $0x210] sm:$0xff]
  %v78 = vld [vmem:[%s0 + $0x218] sm:$0xff]
  %v79 = vld [vmem:[%s0 + $0x220] sm:$0xff]
  %v80 = vld [vmem:[%s0 + $0x228] sm:$0xff]
  %v81 = vld [vmem:[%s1] sm:$0xff]
  %v82 = vld [vmem:[%s1 + $0x8] sm:$0xff]
  %v83 = vld [vmem:[%s1 + $0x10] sm:$0xff]
  %v84 = vld [vmem:[%s1 + $0x18] sm:$0xff]
  %v85 = vld [vmem:[%s1 + $0x20] sm:$0xff]
  %v86 = vld [vmem:[%s1 + $0x28] sm:$0xff]
  %v87 = vld [vmem:[%s1 + $0x30] sm:$0xff]
  %v88 = vld [vmem:[%s1 + $0x38] sm:$0xff]
  %v89 = vld [vmem:[%s1 + $0x40] sm:$0x3f]
  %v99 = vlaneseq
  %v100 = vshrl.u32 %v99, 7
  %v101 = vsub.s32 0, %v100
  %v102 = vrot.slane %v81, %v101
  %v103 = vlaneseq
  %v104 = vshrl.u32 %v103, 7
  %v105 = vsub.s32 1, %v104
  %v106 = vrot.slane %v81, %v105
  %v107 = vlaneseq
  %v108 = vshrl.u32 %v107, 7
  %v109 = vsub.s32 2, %v108
  %v110 = vrot.slane %v81, %v109
  %v111 = vlaneseq
  %v112 = vshrl.u32 %v111, 7
  %v113 = vsub.s32 3, %v112
  %v114 = vrot.slane %v81, %v113
  %v115 = vlaneseq
  %v116 = vshrl.u32 %v115, 7
  %v117 = vsub.s32 4, %v116
  %v118 = vrot.slane %v81, %v117
  %v119 = vlaneseq
  %v120 = vshrl.u32 %v119, 7
  %v121 = vsub.s32 5, %v120
  %v122 = vrot.slane %v81, %v121
  %v123 = vlaneseq
  %v124 = vshrl.u32 %v123, 7
  %v125 = vsub.s32 6, %v124
  %v126 = vrot.slane %v81, %v125
  %v127 = vlaneseq
  %v128 = vshrl.u32 %v127, 7
  %v129 = vsub.s32 7, %v128
  %v130 = vrot.slane %v81, %v129
  %v131 = vlaneseq
  %v132 = vshrl.u32 %v131, 7
  %v133 = vsub.s32 0, %v132
  %v134 = vrot.slane %v82, %v133
  %v135 = vlaneseq
  %v136 = vshrl.u32 %v135, 7
  %v137 = vsub.s32 1, %v136
  %v138 = vrot.slane %v82, %v137
  %v139 = vlaneseq
  %v140 = vshrl.u32 %v139, 7
  %v141 = vsub.s32 2, %v140
  %v142 = vrot.slane %v82, %v141
  %v143 = vlaneseq
  %v144 = vshrl.u32 %v143, 7
  %v145 = vsub.s32 3, %v144
  %v146 = vrot.slane %v82, %v145
  %v147 = vlaneseq
  %v148 = vshrl.u32 %v147, 7
  %v149 = vsub.s32 4, %v148
  %v150 = vrot.slane %v82, %v149
  %v151 = vlaneseq
  %v152 = vshrl.u32 %v151, 7
  %v153 = vsub.s32 5, %v152
  %v154 = vrot.slane %v82, %v153
  %v155 = vlaneseq
  %v156 = vshrl.u32 %v155, 7
  %v157 = vsub.s32 6, %v156
  %v158 = vrot.slane %v82, %v157
  %v159 = vlaneseq
  %v160 = vshrl.u32 %v159, 7
  %v161 = vsub.s32 7, %v160
  %v162 = vrot.slane %v82, %v161
  %v163 = vlaneseq
  %v164 = vshrl.u32 %v163, 7
  %v165 = vsub.s32 0, %v164
  %v166 = vrot.slane %v83, %v165
  %v167 = vlaneseq
  %v168 = vshrl.u32 %v167, 7
  %v169 = vsub.s32 1, %v168
  %v170 = vrot.slane %v83, %v169
  %v171 = vlaneseq
  %v172 = vshrl.u32 %v171, 7
  %v173 = vsub.s32 2, %v172
  %v174 = vrot.slane %v83, %v173
  %v175 = vlaneseq
  %v176 = vshrl.u32 %v175, 7
  %v177 = vsub.s32 3, %v176
  %v178 = vrot.slane %v83, %v177
  %v179 = vlaneseq
  %v180 = vshrl.u32 %v179, 7
  %v181 = vsub.s32 4, %v180
  %v182 = vrot.slane %v83, %v181
  %v183 = vlaneseq
  %v184 = vshrl.u32 %v183, 7
  %v185 = vsub.s32 5, %v184
  %v186 = vrot.slane %v83, %v185
  %v187 = vlaneseq
  %v188 = vshrl.u32 %v187, 7
  %v189 = vsub.s32 6, %v188
  %v190 = vrot.slane %v83, %v189
  %v191 = vlaneseq
  %v192 = vshrl.u32 %v191, 7
  %v193 = vsub.s32 7, %v192
  %v194 = vrot.slane %v83, %v193
  %v195 = vlaneseq
  %v196 = vshrl.u32 %v195, 7
  %v197 = vsub.s32 0, %v196
  %v198 = vrot.slane %v84, %v197
  %v199 = vlaneseq
  %v200 = vshrl.u32 %v199, 7
  %v201 = vsub.s32 1, %v200
  %v202 = vrot.slane %v84, %v201
  %v203 = vlaneseq
  %v204 = vshrl.u32 %v203, 7
  %v205 = vsub.s32 2, %v204
  %v206 = vrot.slane %v84, %v205
  %v207 = vlaneseq
  %v208 = vshrl.u32 %v207, 7
  %v209 = vsub.s32 3, %v208
  %v210 = vrot.slane %v84, %v209
  %v211 = vlaneseq
  %v212 = vshrl.u32 %v211, 7
  %v213 = vsub.s32 4, %v212
  %v214 = vrot.slane %v84, %v213
  %v215 = vlaneseq
  %v216 = vshrl.u32 %v215, 7
  %v217 = vsub.s32 5, %v216
  %v218 = vrot.slane %v84, %v217
  %v219 = vlaneseq
  %v220 = vshrl.u32 %v219, 7
  %v221 = vsub.s32 6, %v220
  %v222 = vrot.slane %v84, %v221
  %v223 = vlaneseq
  %v224 = vshrl.u32 %v223, 7
  %v225 = vsub.s32 7, %v224
  %v226 = vrot.slane %v84, %v225
  %v227 = vlaneseq
  %v228 = vshrl.u32 %v227, 7
  %v229 = vsub.s32 0, %v228
  %v230 = vrot.slane %v85, %v229
  %v231 = vlaneseq
  %v232 = vshrl.u32 %v231, 7
  %v233 = vsub.s32 1, %v232
  %v234 = vrot.slane %v85, %v233
  %v235 = vlaneseq
  %v236 = vshrl.u32 %v235, 7
  %v237 = vsub.s32 2, %v236
  %v238 = vrot.slane %v85, %v237
  %v239 = vlaneseq
  %v240 = vshrl.u32 %v239, 7
  %v241 = vsub.s32 3, %v240
  %v242 = vrot.slane %v85, %v241
  %v243 = vlaneseq
  %v244 = vshrl.u32 %v243, 7
  %v245 = vsub.s32 4, %v244
  %v246 = vrot.slane %v85, %v245
  %v247 = vlaneseq
  %v248 = vshrl.u32 %v247, 7
  %v249 = vsub.s32 5, %v248
  %v250 = vrot.slane %v85, %v249
  %v251 = vlaneseq
  %v252 = vshrl.u32 %v251, 7
  %v253 = vsub.s32 6, %v252
  %v254 = vrot.slane %v85, %v253
  %v255 = vlaneseq
  %v256 = vshrl.u32 %v255, 7
  %v257 = vsub.s32 7, %v256
  %v258 = vrot.slane %v85, %v257
  %v259 = vlaneseq
  %v260 = vshrl.u32 %v259, 7
  %v261 = vsub.s32 0, %v260
  %v262 = vrot.slane %v86, %v261
  %v263 = vlaneseq
  %v264 = vshrl.u32 %v263, 7
  %v265 = vsub.s32 1, %v264
  %v266 = vrot.slane %v86, %v265
  %v267 = vlaneseq
  %v268 = vshrl.u32 %v267, 7
  %v269 = vsub.s32 2, %v268
  %v270 = vrot.slane %v86, %v269
  %v271 = vlaneseq
  %v272 = vshrl.u32 %v271, 7
  %v273 = vsub.s32 3, %v272
  %v274 = vrot.slane %v86, %v273
  %v275 = vlaneseq
  %v276 = vshrl.u32 %v275, 7
  %v277 = vsub.s32 4, %v276
  %v278 = vrot.slane %v86, %v277
  %v279 = vlaneseq
  %v280 = vshrl.u32 %v279, 7
  %v281 = vsub.s32 5, %v280
  %v282 = vrot.slane %v86, %v281
  %v283 = vlaneseq
  %v284 = vshrl.u32 %v283, 7
  %v285 = vsub.s32 6, %v284
  %v286 = vrot.slane %v86, %v285
  %v287 = vlaneseq
  %v288 = vshrl.u32 %v287, 7
  %v289 = vsub.s32 7, %v288
  %v290 = vrot.slane %v86, %v289
  %v291 = vlaneseq
  %v292 = vshrl.u32 %v291, 7
  %v293 = vsub.s32 0, %v292
  %v294 = vrot.slane %v87, %v293
  %v295 = vlaneseq
  %v296 = vshrl.u32 %v295, 7
  %v297 = vsub.s32 1, %v296
  %v298 = vrot.slane %v87, %v297
  %v299 = vlaneseq
  %v300 = vshrl.u32 %v299, 7
  %v301 = vsub.s32 2, %v300
  %v302 = vrot.slane %v87, %v301
  %v303 = vlaneseq
  %v304 = vshrl.u32 %v303, 7
  %v305 = vsub.s32 3, %v304
  %v306 = vrot.slane %v87, %v305
  %v307 = vlaneseq
  %v308 = vshrl.u32 %v307, 7
  %v309 = vsub.s32 4, %v308
  %v310 = vrot.slane %v87, %v309
  %v311 = vlaneseq
  %v312 = vshrl.u32 %v311, 7
  %v313 = vsub.s32 5, %v312
  %v314 = vrot.slane %v87, %v313
  %v315 = vlaneseq
  %v316 = vshrl.u32 %v315, 7
  %v317 = vsub.s32 6, %v316
  %v318 = vrot.slane %v87, %v317
  %v319 = vlaneseq
  %v320 = vshrl.u32 %v319, 7
  %v321 = vsub.s32 7, %v320
  %v322 = vrot.slane %v87, %v321
  %v323 = vlaneseq
  %v324 = vshrl.u32 %v323, 7
  %v325 = vsub.s32 0, %v324
  %v326 = vrot.slane %v88, %v325
  %v327 = vlaneseq
  %v328 = vshrl.u32 %v327, 7
  %v329 = vsub.s32 1, %v328
  %v330 = vrot.slane %v88, %v329
  %v331 = vlaneseq
  %v332 = vshrl.u32 %v331, 7
  %v333 = vsub.s32 2, %v332
  %v334 = vrot.slane %v88, %v333
  %v335 = vlaneseq
  %v336 = vshrl.u32 %v335, 7
  %v337 = vsub.s32 3, %v336
  %v338 = vrot.slane %v88, %v337
  %v339 = vlaneseq
  %v340 = vshrl.u32 %v339, 7
  %v341 = vsub.s32 4, %v340
  %v342 = vrot.slane %v88, %v341
  %v343 = vlaneseq
  %v344 = vshrl.u32 %v343, 7
  %v345 = vsub.s32 5, %v344
  %v346 = vrot.slane %v88, %v345
  %v347 = vlaneseq
  %v348 = vshrl.u32 %v347, 7
  %v349 = vsub.s32 6, %v348
  %v350 = vrot.slane %v88, %v349
  %v351 = vlaneseq
  %v352 = vshrl.u32 %v351, 7
  %v353 = vsub.s32 7, %v352
  %v354 = vrot.slane %v88, %v353
  %v355 = vlaneseq
  %v356 = vshrl.u32 %v355, 7
  %v357 = vsub.s32 0, %v356
  %v358 = vrot.slane %v89, %v357
  %v359 = vlaneseq
  %v360 = vshrl.u32 %v359, 7
  %v361 = vsub.s32 1, %v360
  %v362 = vrot.slane %v89, %v361
  %v363 = vlaneseq
  %v364 = vshrl.u32 %v363, 7
  %v365 = vsub.s32 2, %v364
  %v366 = vrot.slane %v89, %v365
  %v367 = vlaneseq
  %v368 = vshrl.u32 %v367, 7
  %v369 = vsub.s32 3, %v368
  %v370 = vrot.slane %v89, %v369
  %v371 = vlaneseq
  %v372 = vshrl.u32 %v371, 7
  %v373 = vsub.s32 4, %v372
  %v374 = vrot.slane %v89, %v373
  %v375 = vlaneseq
  %v376 = vshrl.u32 %v375, 7
  %v377 = vsub.s32 5, %v376
  %v378 = vrot.slane %v89, %v377
  %v449 = vadd.f32 %v11, %v102
  %v450 = vadd.f32 %v12, %v106
  %v451 = vadd.f32 %v13, %v110
  %v452 = vadd.f32 %v14, %v114
  %v453 = vadd.f32 %v15, %v118
  %v454 = vadd.f32 %v16, %v122
  %v455 = vadd.f32 %v17, %v126
  %v456 = vadd.f32 %v18, %v130
  %v457 = vadd.f32 %v19, %v134
  %v458 = vadd.f32 %v20, %v138
  %v459 = vadd.f32 %v21, %v142
  %v460 = vadd.f32 %v22, %v146
  %v461 = vadd.f32 %v23, %v150
  %v462 = vadd.f32 %v24, %v154
  %v463 = vadd.f32 %v25, %v158
  %v464 = vadd.f32 %v26, %v162
  %v465 = vadd.f32 %v27, %v166
  %v466 = vadd.f32 %v28, %v170
  %v467 = vadd.f32 %v29, %v174
  %v468 = vadd.f32 %v30, %v178
  %v469 = vadd.f32 %v31, %v182
  %v470 = vadd.f32 %v32, %v186
  %v471 = vadd.f32 %v33, %v190
  %v472 = vadd.f32 %v34, %v194
  %v473 = vadd.f32 %v35, %v198
  %v474 = vadd.f32 %v36, %v202
  %v475 = vadd.f32 %v37, %v206
  %v476 = vadd.f32 %v38, %v210
  %v477 = vadd.f32 %v39, %v214
  %v478 = vadd.f32 %v40, %v218
  %v479 = vadd.f32 %v41, %v222
  %v480 = vadd.f32 %v42, %v226
  %v481 = vadd.f32 %v43, %v230
  %v482 = vadd.f32 %v44, %v234
  %v483 = vadd.f32 %v45, %v238
  %v484 = vadd.f32 %v46, %v242
  %v485 = vadd.f32 %v47, %v246
  %v486 = vadd.f32 %v48, %v250
  %v487 = vadd.f32 %v49, %v254
  %v488 = vadd.f32 %v50, %v258
  %v489 = vadd.f32 %v51, %v262
  %v490 = vadd.f32 %v52, %v266
  %v491 = vadd.f32 %v53, %v270
  %v492 = vadd.f32 %v54, %v274
  %v493 = vadd.f32 %v55, %v278
  %v494 = vadd.f32 %v56, %v282
  %v495 = vadd.f32 %v57, %v286
  %v496 = vadd.f32 %v58, %v290
  %v497 = vadd.f32 %v59, %v294
  %v498 = vadd.f32 %v60, %v298
  %v499 = vadd.f32 %v61, %v302
  %v500 = vadd.f32 %v62, %v306
  %v501 = vadd.f32 %v63, %v310
  %v502 = vadd.f32 %v64, %v314
  %v503 = vadd.f32 %v65, %v318
  %v504 = vadd.f32 %v66, %v322
  %v505 = vadd.f32 %v67, %v326
  %v506 = vadd.f32 %v68, %v330
  %v507 = vadd.f32 %v69, %v334
  %v508 = vadd.f32 %v70, %v338
  %v509 = vadd.f32 %v71, %v342
  %v510 = vadd.f32 %v72, %v346
  %v511 = vadd.f32 %v73, %v350
  %v512 = vadd.f32 %v74, %v354
  %v513 = vadd.f32 %v75, %v358
  %v514 = vadd.f32 %v76, %v362
  %v515 = vadd.f32 %v77, %v366
  %v516 = vadd.f32 %v78, %v370
  %v517 = vadd.f32 %v79, %v374
  %v518 = vadd.f32 %v80, %v378
  %519 = vst [vmem:[%s2] sm:$0xff] %v449
  %520 = vst [vmem:[%s2 + $0x8] sm:$0xff] %v450
  %521 = vst [vmem:[%s2 + $0x10] sm:$0xff] %v451
  %522 = vst [vmem:[%s2 + $0x18] sm:$0xff] %v452
  %523 = vst [vmem:[%s2 + $0x20] sm:$0xff] %v453
  %524 = vst [vmem:[%s2 + $0x28] sm:$0xff] %v454
  %525 = vst [vmem:[%s2 + $0x30] sm:$0xff] %v455
  %526 = vst [vmem:[%s2 + $0x38] sm:$0xff] %v456
  %527 = vst [vmem:[%s2 + $0x40] sm:$0xff] %v457
  %528 = vst [vmem:[%s2 + $0x48] sm:$0xff] %v458
  %529 = vst [vmem:[%s2 + $0x50] sm:$0xff] %v459
  %530 = vst [vmem:[%s2 + $0x58] sm:$0xff] %v460
  %531 = vst [vmem:[%s2 + $0x60] sm:$0xff] %v461
  %532 = vst [vmem:[%s2 + $0x68] sm:$0xff] %v462
  %533 = vst [vmem:[%s2 + $0x70] sm:$0xff] %v463
  %534 = vst [vmem:[%s2 + $0x78] sm:$0xff] %v464
  %535 = vst [vmem:[%s2 + $0x80] sm:$0xff] %v465
  %536 = vst [vmem:[%s2 + $0x88] sm:$0xff] %v466
  %537 = vst [vmem:[%s2 + $0x90] sm:$0xff] %v467
  %538 = vst [vmem:[%s2 + $0x98] sm:$0xff] %v468
  %539 = vst [vmem:[%s2 + $0xa0] sm:$0xff] %v469
  %540 = vst [vmem:[%s2 + $0xa8] sm:$0xff] %v470
  %541 = vst [vmem:[%s2 + $0xb0] sm:$0xff] %v471
  %542 = vst [vmem:[%s2 + $0xb8] sm:$0xff] %v472
  %543 = vst [vmem:[%s2 + $0xc0] sm:$0xff] %v473
  %544 = vst [vmem:[%s2 + $0xc8] sm:$0xff] %v474
  %545 = vst [vmem:[%s2 + $0xd0] sm:$0xff] %v475
  %546 = vst [vmem:[%s2 + $0xd8] sm:$0xff] %v476
  %547 = vst [vmem:[%s2 + $0xe0] sm:$0xff] %v477
  %548 = vst [vmem:[%s2 + $0xe8] sm:$0xff] %v478
  %549 = vst [vmem:[%s2 + $0xf0] sm:$0xff] %v479
  %550 = vst [vmem:[%s2 + $0xf8] sm:$0xff] %v480
  %551 = vst [vmem:[%s2 + $0x100] sm:$0xff] %v481
  %552 = vst [vmem:[%s2 + $0x108] sm:$0xff] %v482
  %553 = vst [vmem:[%s2 + $0x110] sm:$0xff] %v483
  %554 = vst [vmem:[%s2 + $0x118] sm:$0xff] %v484
  %555 = vst [vmem:[%s2 + $0x120] sm:$0xff] %v485
  %556 = vst [vmem:[%s2 + $0x128] sm:$0xff] %v486
  %557 = vst [vmem:[%s2 + $0x130] sm:$0xff] %v487
  %558 = vst [vmem:[%s2 + $0x138] sm:$0xff] %v488
  %559 = vst [vmem:[%s2 + $0x140] sm:$0xff] %v489
  %560 = vst [vmem:[%s2 + $0x148] sm:$0xff] %v490
  %561 = vst [vmem:[%s2 + $0x150] sm:$0xff] %v491
  %562 = vst [vmem:[%s2 + $0x158] sm:$0xff] %v492
  %563 = vst [vmem:[%s2 + $0x160] sm:$0xff] %v493
  %564 = vst [vmem:[%s2 + $0x168] sm:$0xff] %v494
  %565 = vst [vmem:[%s2 + $0x170] sm:$0xff] %v495
  %566 = vst [vmem:[%s2 + $0x178] sm:$0xff] %v496
  %567 = vst [vmem:[%s2 + $0x180] sm:$0xff] %v497
  %568 = vst [vmem:[%s2 + $0x188] sm:$0xff] %v498
  %569 = vst [vmem:[%s2 + $0x190] sm:$0xff] %v499
  %570 = vst [vmem:[%s2 + $0x198] sm:$0xff] %v500
  %571 = vst [vmem:[%s2 + $0x1a0] sm:$0xff] %v501
  %572 = vst [vmem:[%s2 + $0x1a8] sm:$0xff] %v502
  %573 = vst [vmem:[%s2 + $0x1b0] sm:$0xff] %v503
  %574 = vst [vmem:[%s2 + $0x1b8] sm:$0xff] %v504
  %575 = vst [vmem:[%s2 + $0x1c0] sm:$0xff] %v505
  %576 = vst [vmem:[%s2 + $0x1c8] sm:$0xff] %v506
  %577 = vst [vmem:[%s2 + $0x1d0] sm:$0xff] %v507
  %578 = vst [vmem:[%s2 + $0x1d8] sm:$0xff] %v508
  %579 = vst [vmem:[%s2 + $0x1e0] sm:$0xff] %v509
  %580 = vst [vmem:[%s2 + $0x1e8] sm:$0xff] %v510
  %581 = vst [vmem:[%s2 + $0x1f0] sm:$0xff] %v511
  %582 = vst [vmem:[%s2 + $0x1f8] sm:$0xff] %v512
  %583 = vst [vmem:[%s2 + $0x200] sm:$0xff] %v513
  %584 = vst [vmem:[%s2 + $0x208] sm:$0xff] %v514
  %585 = vst [vmem:[%s2 + $0x210] sm:$0xff] %v515
  %586 = vst [vmem:[%s2 + $0x218] sm:$0xff] %v516
  %587 = vst [vmem:[%s2 + $0x220] sm:$0xff] %v517
  %588 = vst [vmem:[%s2 + $0x228] sm:$0xff] %v518
  // Predicated region
  $region10: #{_lambda_.1} parent=0 // pred_check
    _
  $region11: #{_lambda_.1} parent=0 // pred_check_branch
    %590 = sbr.rel (0) target = $region13
  $region12: #{_lambda_.1} parent=0 // pred_region
    _
  $region13: #{_lambda_.1} parent=0 // pred_fallthru
    _
  // Predicated region
  $region14: #{_lambda_.1} parent=0 // pred_check
    _
  $region15: #{_lambda_.1} parent=0 // pred_check_branch
    %592 = sbr.rel (0) target = $region17
  $region16: #{_lambda_.1} parent=0 // pred_region
    _
  $region17: #{_lambda_.1} parent=0 // pred_fallthru
    _

</llo_original>
